<compile_context>
chip_gen: v6e
topology: v6e:2x2x1
jax: 0.10.0
libtpu: 0.0.40
codegen_flags: <defaults>
</compile_context>

<pallas_src>
import functools

import jax
import jax.numpy as jnp
from jax import lax
from jax.experimental import pallas as pl
from jax.experimental.pallas import tpu as pltpu


def _round_up(x, mult):
    return (x + mult - 1) // mult * mult


def _tile_target_for_device():
    """HBM-roofline-friendly N-tile target per TPU generation."""
    try:
        kind = jax.devices()[0].device_kind.lower()
    except Exception:
        return 16384
    if "v5 lite" in kind or "v5e" in kind or "v5lite" in kind:
        return 8192
    if "v7" in kind:
        return 32768
    if "v6" in kind or "trillium" in kind:
        return 16384
    return 16384


def plan_tiles(n_valid, *, tile_n=None, num_splits=2, target=None):
    """Pick (tile_n, num_splits, n_pad) for a bank with n_valid real columns."""
    if target is None:
        target = _tile_target_for_device()
    if tile_n is None:
        tile_n = min(_round_up(target, 128), _round_up(n_valid, 128))
    tile_n = max(128, _round_up(tile_n, 128))
    # Too few tiles to split across cores -> don't pad with pure dummy work.
    if num_splits > 1 and _round_up(n_valid, tile_n) // tile_n < num_splits:
        num_splits = 1
    n_pad = _round_up(n_valid, tile_n * num_splits)
    return tile_n, num_splits, n_pad


def pack_bank(U, Y, *, bit, n_pad, dtype=jnp.float32):
    """Fused, transposed, padded memory bank: (bit + C + 1, n_pad).

    rows [0,bit)=U^T, rows [bit,bit+C)=Y^T, row bit+C = ||U[n]||^2.
    Padded columns get U=Y=0 and a sentinel norm 4*m so they contribute 0."""
    n, bit_ = U.shape
    assert bit_ == bit
    c = Y.shape[1]
    m = 2.0 * bit
    u_stored = U.astype(dtype).astype(jnp.float32)          # values as stored
    norms = jnp.sum(u_stored * u_stored, axis=1)             # (n,) f32
    bank = jnp.concatenate(
        [u_stored.T, Y.astype(jnp.float32).T, norms[None, :]], axis=0)
    pad = n_pad - n
    if pad > 0:
        pad_block = jnp.zeros((bit + c + 1, pad), jnp.float32)
        pad_block = pad_block.at[bit + c, :].set(4.0 * m)     # neutral sentinel
        bank = jnp.concatenate([bank, pad_block], axis=1)
    return bank.astype(dtype)


def _dsh_loss_kernel(u_ref, y_ref, bank_ref, out_ref, acc_ref, *,
                     m, bit, num_classes):
    t = pl.program_id(1)

    @pl.when(t == 0)
    def _init():
        acc_ref[...] = jnp.zeros_like(acc_ref)

    u = u_ref[...]                                       # (B, bit)  f32, resident
    yb = y_ref[...]                                      # (B, C)    f32, resident
    # Single streamed operand: fused bank tile (bit + C + 1, Tn).
    ut = bank_ref[0:bit, :]                              # (bit, Tn) bank dtype
    yt = bank_ref[bit:bit + num_classes, :]              # (C, Tn)
    bank_sq = bank_ref[bit + num_classes:bit + num_classes + 1, :
                       ].astype(jnp.float32)             # (1, Tn) precomputed ||U||^2

    # Gram expansion: ||u - U||^2 = ||u||^2 + ||U||^2 - (2u).U
    # (-2 folded into the tiny resident lhs; 0.5 factors folded into the final
    #  normalization in the wrapper.)
    dims = (((1,), (0,)), ((), ()))
    u2 = (u + u).astype(ut.dtype)
    cross2 = lax.dot_general(u2, ut, dims, preferred_element_type=jnp.float32)
    sim = lax.dot_general(yb.astype(yt.dtype), yt, dims,
                          preferred_element_type=jnp.float32)

    u_sq = jnp.sum(u * u, axis=1, keepdims=True)          # (B, 1)
    dist = jnp.maximum((u_sq + bank_sq) - cross2, 0.0)    # (B, Tn)

    # sim == 0 (exact: labels are 0/1, f32 accumulation) -> dissimilar -> hinge
    # sim != 0                                            -> similar    -> dist
    acc_ref[...] += jnp.where(sim == 0.0, jnp.maximum(m - dist, 0.0), dist)

    @pl.when(t == pl.num_programs(1) - 1)
    def _finalize():
        out_ref[0] = jnp.sum(acc_ref[...], keepdims=True)  # (1, 1) partial sum


@functools.partial(jax.jit,
                   static_argnames=("bit", "num_classes", "n_valid", "alpha",
                                    "tile_n", "num_splits"),
                   donate_argnums=(3,))
def dsh_loss(u, y, ind, bank_t, *, bit, num_classes, n_valid, alpha=0.01,
             tile_n, num_splits):
    """DSHLoss.forward on a fused transposed bank.  Returns (loss, new bank)."""
    B = u.shape[0]
    C = num_classes
    rows, n_pad = bank_t.shape
    assert rows == bit + C + 1 and u.shape[1] == bit and y.shape[1] == C
    assert n_pad % (tile_n * num_splits) == 0, (n_pad, tile_n, num_splits)
    tiles_per_split = n_pad // (tile_n * num_splits)

    u = u.astype(jnp.float32)
    y = y.astype(jnp.float32)

    # Memory-bank update (plain-JAX scatter; bank_t is donated -> in place).
    dt = bank_t.dtype
    u_stored = u.astype(dt).astype(jnp.float32)           # values as stored
    new_cols = jnp.concatenate(
        [u_stored.T, y.T, jnp.sum(u_stored * u_stored, axis=1)[None, :]], axis=0)
    bank_t = bank_t.at[:, ind].set(new_cols.astype(dt))

    m = 2.0 * bit
    kernel = functools.partial(_dsh_loss_kernel, m=m, bit=bit, num_classes=C)

    partials = pl.pallas_call(
        kernel,
        out_shape=jax.ShapeDtypeStruct((num_splits, 1, 1), jnp.float32),
        grid_spec=pltpu.PrefetchScalarGridSpec(
            num_scalar_prefetch=0,
            grid=(num_splits, tiles_per_split),
            in_specs=[
                pl.BlockSpec((B, bit), lambda c, t: (0, 0)),      # u (resident)
                pl.BlockSpec((B, C), lambda c, t: (0, 0)),        # y (resident)
                pl.BlockSpec((bit + C + 1, tile_n),               # fused bank stream
                             lambda c, t: (0, c * tiles_per_split + t)),
            ],
            out_specs=pl.BlockSpec((1, 1, 1), lambda c, t: (c, 0, 0)),
            scratch_shapes=[pltpu.VMEM((B, tile_n), jnp.float32)],  # vector accumulator
        ),
        compiler_params=pltpu.CompilerParams(
            dimension_semantics=("parallel", "arbitrary"),
            vmem_limit_bytes=32 * 1024 * 1024,
        ),
    )(u, y, bank_t)

    # 0.5 loss factors and the mean over the *valid* N are applied exactly once.
    loss1 = 0.5 * jnp.sum(partials) / (B * n_valid)
    loss2 = alpha * jnp.mean(jnp.abs(1.0 - jnp.abs(u)))
    return loss1 + loss2, bank_t


def _reference(u, y, ind, U, Y, *, bit, alpha=0.01):
    """Pure-JAX reference reproducing the PyTorch forward (untransposed banks)."""
    U = U.at[ind, :].set(u.astype(U.dtype))
    Y = Y.at[ind, :].set(y.astype(Y.dtype))
    Uf = U.astype(jnp.float32)
    Yf = Y.astype(jnp.float32)
    m = 2.0 * bit
    u = u.astype(jnp.float32)
    y = y.astype(jnp.float32)
    dist = jnp.sum((u[:, None, :] - Uf[None, :, :]) ** 2, axis=2)
    s = (y @ Yf.T == 0).astype(jnp.float32)
    loss = (1.0 - s) / 2.0 * dist + s / 2.0 * jnp.maximum(m - dist, 0.0)
    loss1 = jnp.mean(loss)
    loss2 = alpha * jnp.mean(jnp.abs(1.0 - jnp.abs(u)))
    return loss1 + loss2


if __name__ == "__main__":
    # small synthetic config; num_samples deliberately NOT a multiple of 128 so
    # the sentinel-norm padding path is exercised.
    NUM_SAMPLES = 500
    NUM_CLASSES = 8
    BIT = 16
    BATCH = 8
    ALPHA = 0.01

    key = jax.random.PRNGKey(0)
    k_u, k_y, k_U, k_Y, k_ind = jax.random.split(key, 5)

    # module "state": the U / Y memory banks (torch init is zeros; pre-fill so
    # the pairwise terms are nontrivial)
    U0 = jnp.tanh(jax.random.normal(k_U, (NUM_SAMPLES, BIT), dtype=jnp.float32))
    Y0 = (jax.random.uniform(k_Y, (NUM_SAMPLES, NUM_CLASSES)) > 0.7).astype(jnp.float32)

    # current batch
    u = jnp.tanh(jax.random.normal(k_u, (BATCH, BIT), dtype=jnp.float32))
    y = jax.nn.one_hot(
        jax.random.randint(k_y, (BATCH,), 0, NUM_CLASSES), NUM_CLASSES
    ).astype(jnp.float32)
    ind = jax.random.permutation(k_ind, NUM_SAMPLES)[:BATCH]

    ref32 = jax.block_until_ready(
        _reference(u, y, ind, U0, Y0, bit=BIT, alpha=ALPHA))

    # --- exact-parity path: f32 bank, small tiles + 2-way core split ----------
    # (tile_n=128 forced so the multi-step accumulator, the 2-way parallel grid
    #  axis and the padded-column path are all exercised at small N)
    tile_n, num_splits, n_pad = plan_tiles(NUM_SAMPLES, tile_n=128, num_splits=2)
    bank32 = pack_bank(U0, Y0, bit=BIT, n_pad=n_pad, dtype=jnp.float32)
    loss32, bank32_new = dsh_loss(
        u, y, ind, bank32, bit=BIT, num_classes=NUM_CLASSES,
        n_valid=NUM_SAMPLES, alpha=ALPHA, tile_n=tile_n, num_splits=num_splits)
    loss32 = jax.block_until_ready(loss32)
    assert jnp.allclose(loss32, ref32, rtol=1e-4, atol=1e-4), (loss32, ref32)
    # memory-bank update semantics (U / Y rows of the fused bank)
    assert jnp.allclose(bank32_new[:BIT, :NUM_SAMPLES].T,
                        U0.at[ind, :].set(u)), "U bank update mismatch"
    assert jnp.allclose(bank32_new[BIT:BIT + NUM_CLASSES, :NUM_SAMPLES].T,
                        Y0.at[ind, :].set(y)), "Y bank update mismatch"

    # --- production path: bf16 bank stream, auto (generation-dependent) tile --
    tile_a, splits_a, n_pad_a = plan_tiles(NUM_SAMPLES)
    bank16 = pack_bank(U0, Y0, bit=BIT, n_pad=n_pad_a, dtype=jnp.bfloat16)
    loss16, _ = dsh_loss(
        u, y, ind, bank16, bit=BIT, num_classes=NUM_CLASSES,
        n_valid=NUM_SAMPLES, alpha=ALPHA, tile_n=tile_a, num_splits=splits_a)
    loss16 = jax.block_until_ready(loss16)
    ref16 = jax.block_until_ready(_reference(
        u, y, ind, U0.astype(jnp.bfloat16), Y0.astype(jnp.bfloat16),
        bit=BIT, alpha=ALPHA))
    assert jnp.allclose(loss16, ref16, rtol=2e-2, atol=2e-2), (loss16, ref16)

    print("KERNEL_OK")
</pallas_src>

<mosaic_0001>
module attributes {stable_mosaic.version = 11 : i64} {
  func.func @_dsh_loss_kernel(%arg0: i32, %arg1: i32, %arg2: memref<8x16xf32, #tpu.memory_space<vmem>>, %arg3: memref<8x8xf32, #tpu.memory_space<vmem>>, %arg4: memref<25x128xf32, #tpu.memory_space<vmem>>, %arg5: memref<1x1x1xf32, #tpu.memory_space<vmem>>, %arg6: memref<8x128xf32, #tpu.memory_space<vmem>>) attributes {dimension_semantics = [#tpu.dimension_semantics<parallel>, #tpu.dimension_semantics<arbitrary>], iteration_bounds = array<i64: 2, 2>, scalar_prefetch = 0 : i64, scratch_operands = 1 : i64, tpu.core_type = #tpu.core_type<tc>, window_params = [{pipeline_mode = #tpu.pipeline_mode<synchronous>, transform_indices = @transform_0, window_bounds = array<i64: 8, 16>}, {pipeline_mode = #tpu.pipeline_mode<synchronous>, transform_indices = @transform_1, window_bounds = array<i64: 8, 8>}, {transform_indices = @transform_2, window_bounds = array<i64: 25, 128>}, {transform_indices = @transform_3, window_bounds = array<i64: 1, 1, 1>}]} {
    %c0_i32 = arith.constant 0 : i32
    %0 = arith.cmpi eq, %arg1, %c0_i32 : i32
    %1 = arith.extui %0 : i1 to i32
    %c0_i32_0 = arith.constant 0 : i32
    %2 = arith.cmpi ne, %1, %c0_i32_0 : i32
    scf.if %2 {
      %cst_19 = arith.constant 0.000000e+00 : f32
      %33 = vector.broadcast %cst_19 : f32 to vector<8x128xf32>
      %c0_20 = arith.constant 0 : index
      %c0_21 = arith.constant 0 : index
      %34 = vector.load %arg6[%c0_20, %c0_21] : memref<8x128xf32, #tpu.memory_space<vmem>>, vector<8x128xf32>
      tpu.vector_store %arg6[%c0_20, %c0_21], %33 {strides = array<i32>} : memref<8x128xf32, #tpu.memory_space<vmem>>, vector<8x128xf32>,
    } else {
    }
    %c0 = arith.constant 0 : index
    %c0_1 = arith.constant 0 : index
    %3 = vector.load %arg2[%c0, %c0_1] : memref<8x16xf32, #tpu.memory_space<vmem>>, vector<8x16xf32>
    %c0_2 = arith.constant 0 : index
    %c0_3 = arith.constant 0 : index
    %4 = vector.load %arg3[%c0_2, %c0_3] : memref<8x8xf32, #tpu.memory_space<vmem>>, vector<8x8xf32>
    %c0_4 = arith.constant 0 : index
    %c0_5 = arith.constant 0 : index
    %5 = vector.load %arg4[%c0_4, %c0_5] : memref<25x128xf32, #tpu.memory_space<vmem>>, vector<16x128xf32>
    %c16 = arith.constant 16 : index
    %c0_6 = arith.constant 0 : index
    %6 = vector.load %arg4[%c16, %c0_6] : memref<25x128xf32, #tpu.memory_space<vmem>>, vector<8x128xf32>
    %c24 = arith.constant 24 : index
    %c0_7 = arith.constant 0 : index
    %7 = vector.load %arg4[%c24, %c0_7] : memref<25x128xf32, #tpu.memory_space<vmem>>, vector<1x128xf32>
    %8 = arith.addf %3, %3 : vector<8x16xf32>
    %cst = arith.constant dense<0.000000e+00> : vector<8x128xf32>
    %9 = tpu.matmul %8, %5, %cst {dimension_numbers = #tpu.dot_dimension_numbers<[1], [0], [0], [1], [0, 0, 1, 1], [], []>} : vector<8x16xf32>, vector<16x128xf32>, vector<8x128xf32> -> vector<8x128xf32>
    %cst_8 = arith.constant dense<0.000000e+00> : vector<8x128xf32>
    %10 = tpu.matmul %4, %6, %cst_8 {dimension_numbers = #tpu.dot_dimension_numbers<[1], [0], [0], [1], [0, 0, 1, 1], [], []>} : vector<8x8xf32>, vector<8x128xf32>, vector<8x128xf32> -> vector<8x128xf32>
    %11 = arith.mulf %3, %3 : vector<8x16xf32>
    %cst_9 = arith.constant dense<0.000000e+00> : vector<8xf32>
    %12 = vector.multi_reduction <add>, %11, %cst_9 [1] : vector<8x16xf32> to vector<8xf32>
    %13 = vector.shape_cast %12 : vector<8xf32> to vector<8x1xf32>
    %14 = vector.broadcast %13 : vector<8x1xf32> to vector<8x128xf32>
    %15 = vector.broadcast %7 : vector<1x128xf32> to vector<8x128xf32>
    %16 = arith.addf %14, %15 : vector<8x128xf32>
    %17 = arith.subf %16, %9 : vector<8x128xf32>
    %cst_10 = arith.constant 0.000000e+00 : f32
    %18 = vector.broadcast %cst_10 : f32 to vector<8x128xf32>
    %19 = arith.maximumf %17, %18 : vector<8x128xf32>
    %c0_11 = arith.constant 0 : index
    %c0_12 = arith.constant 0 : index
    %20 = vector.load %arg6[%c0_11, %c0_12] : memref<8x128xf32, #tpu.memory_space<vmem>>, vector<8x128xf32>
    %cst_13 = arith.constant 0.000000e+00 : f32
    %21 = vector.broadcast %cst_13 : f32 to vector<8x128xf32>
    %22 = arith.cmpf oeq, %10, %21 : vector<8x128xf32>
    %cst_14 = arith.constant 3.200000e+01 : f32
    %23 = vector.broadcast %cst_14 : f32 to vector<8x128xf32>
    %24 = arith.subf %23, %19 : vector<8x128xf32>
    %cst_15 = arith.constant 0.000000e+00 : f32
    %25 = vector.broadcast %cst_15 : f32 to vector<8x128xf32>
    %26 = arith.maximumf %24, %25 : vector<8x128xf32>
    %27 = arith.select %22, %26, %19 : vector<8x128xi1>, vector<8x128xf32>
    %28 = arith.addf %20, %27 : vector<8x128xf32>
    %c0_16 = arith.constant 0 : index
    %c0_17 = arith.constant 0 : index
    %29 = vector.load %arg6[%c0_16, %c0_17] : memref<8x128xf32, #tpu.memory_space<vmem>>, vector<8x128xf32>
    tpu.vector_store %arg6[%c0_16, %c0_17], %28 {strides = array<i32>} : memref<8x128xf32, #tpu.memory_space<vmem>>, vector<8x128xf32>,
    %c1_i32 = arith.constant 1 : i32
    %30 = arith.cmpi eq, %arg1, %c1_i32 : i32
    %31 = arith.extui %30 : i1 to i32
    %c0_i32_18 = arith.constant 0 : i32
    %32 = arith.cmpi ne, %31, %c0_i32_18 : i32
    scf.if %32 {
      %c0_19 = arith.constant 0 : index
      %c0_20 = arith.constant 0 : index
      %33 = vector.load %arg6[%c0_19, %c0_20] : memref<8x128xf32, #tpu.memory_space<vmem>>, vector<8x128xf32>
      %34 = vector.shape_cast %33 : vector<8x128xf32> to vector<1x8x128xf32>
      %cst_21 = arith.constant dense<0.000000e+00> : vector<1xf32>
      %35 = vector.multi_reduction <add>, %34, %cst_21 [1, 2] : vector<1x8x128xf32> to vector<1xf32>
      %36 = vector.shape_cast %35 : vector<1xf32> to vector<1x1x1xf32>
      %37 = vector.extract %36[0, 0, 0] : f32 from vector<1x1x1xf32>
      %38 = vector.broadcast %37 : f32 to vector<1x1xf32>
      %c0_22 = arith.constant 0 : index
      %c0_23 = arith.constant 0 : index
      %c0_24 = arith.constant 0 : index
      %39 = vector.load %arg5[%c0_22, %c0_23, %c0_24] : memref<1x1x1xf32, #tpu.memory_space<vmem>>, vector<1x1x1xf32>
      %40 = vector.shape_cast %39 : vector<1x1x1xf32> to vector<1x1xf32>
      %41 = vector.shape_cast %38 : vector<1x1xf32> to vector<1x1x1xf32>
      tpu.vector_store %arg5[%c0_22, %c0_23, %c0_24], %41 {strides = array<i32>} : memref<1x1x1xf32, #tpu.memory_space<vmem>>, vector<1x1x1xf32>,
    } else {
    }
    return
  }
  func.func @transform_0(%arg0: i32, %arg1: i32) -> (i32, i32) {
    %c0_i32 = arith.constant 0 : i32
    %c0_i32_0 = arith.constant 0 : i32
    %c0_i32_1 = arith.constant 0 : i32
    return %c0_i32, %c0_i32_0 : i32, i32
  }
  func.func @transform_1(%arg0: i32, %arg1: i32) -> (i32, i32) {
    %c0_i32 = arith.constant 0 : i32
    %c0_i32_0 = arith.constant 0 : i32
    %c0_i32_1 = arith.constant 0 : i32
    return %c0_i32, %c0_i32_0 : i32, i32
  }
  func.func @transform_2(%arg0: i32, %arg1: i32) -> (i32, i32) {
    %c2_i32 = arith.constant 2 : i32
    %0 = arith.muli %arg0, %c2_i32 : i32
    %1 = arith.addi %0, %arg1 : i32
    %c0_i32 = arith.constant 0 : i32
    %c0_i32_0 = arith.constant 0 : i32
    return %c0_i32, %1 : i32, i32
  }
  func.func @transform_3(%arg0: i32, %arg1: i32) -> (i32, i32, i32) {
    %c0_i32 = arith.constant 0 : i32
    %c0_i32_0 = arith.constant 0 : i32
    %c0_i32_1 = arith.constant 0 : i32
    return %arg0, %c0_i32, %c0_i32_0 : i32, i32, i32
  }
}

</mosaic_0001>

<llo_original>
// kernel: dsh_loss.1
$region0: #{dsh_loss.1}
  #allocation0 [shape = 'u32[]', space=smem, size = 0x4, offset = 0x4, fixed_abs, tag = 'smem constant byte address 0x4 - core index']
  #allocation1 [shape = 'u32[144,128]{1,0:T(1,128)}', space=vmem, size = 0x12000, scoped, tag = 'internal scratch']
  #allocation2 [shape = 'f32[8,128]{1,0:T(8,128)}', space=vmem, size = 0x1000, scoped, tag = 'scratch operand']
  %s0 = inlined_call_operand.vmem [shape: f32[8,16], index: 0, kind: input, shape index: {}]
  %s1 = inlined_call_operand.vmem [shape: f32[8,8], index: 1, kind: input, shape index: {}]
  %s2 = inlined_call_operand.vmem [shape: f32[25,512], index: 2, kind: input, shape index: {}]
  %s3 = inlined_call_operand.vmem [shape: f32[2,1,1], index: 3, kind: output, shape index: {}]
  %s4 = sld [smem:[#allocation0]]
  $region91: #{dsh_loss.1} parent=0
    _
  %s6 = ssub.s32 1, %s4
  %s7 = scalar_select 0, %s6, %s4
  $region1: #{dsh_loss.1} parent=0
    #allocation3 [shape = 'u8[32768]{0}', space=vmem, size = 0x8000, scoped, tag = 'input window, operand 2']
    loop: start=0, step=1, limit=6
    $region2: #{dsh_loss.1} parent=1 // loop_pre_header
      _
    $region3: #{dsh_loss.1} parent=1 // loop_header
      %s9 = sphi 0, %s13
      %p10 = scmp.ge.s32.totalorder %s9, 6
      %s16 = sphi 0, %s28
      %s17 = sphi 0, %s24
      %s18 = sphi 0, %s16
      %s19 = sphi 0, %s17
      %s20 = sphi 0, %s18
      %s21 = sphi 0, %s19
      %s29 = sphi 0, %s29
      %s31 = sphi 0, %s29
      %s32 = sphi 0, %s31
      %s46 = sphi 0, %s32
      %s50 = sphi 0, %s50
      %s52 = sphi 0, %s50
      %s53 = sphi 0, %s52
      %s67 = sphi 0, %s53
      %s77 = sphi 0, %s79
      %s80 = sphi 0, %s77
      %s81 = sphi 0, %s80
      %s97 = sphi 0, %s81
      %s103 = sphi 0, %s105
      %s106 = sphi 0, %s103
      %s107 = sphi 0, %s106
      %s123 = sphi 0, %s107
    $region4: #{dsh_loss.1} parent=1 // loop_header_branch
      %12 = sbr.rel (%p10) target = $region8
    $region5: #{dsh_loss.1} parent=1 // loop_body
      %s14 = ssub.s32 %s9, 1
      %s15 = ssub.s32 %s9, 2
      %s22 = sadd.s32 1, %s17
      %p23 = scmp.ge.s32.totalorder %s22, 2
      %s24 = scalar_select %p23, 0, %s22
      %s25 = sadd.s32 1, %s16
      %s26 = scalar_select %p23, %s25, %s16
      %p27 = scmp.ge.s32.totalorder %s26, 2
      %s28 = scalar_select %p27, 0, %s26
      %s30 = sadd.s32 %s29, 1
      %p33 = scmp.eq.s32.totalorder %s9, 3
      %p34 = scmp.ne.s32.totalorder %s29, %s31
      %p35 = scmp.eq.s32.totalorder %s9, 0
      %p36 = por %p34, %p35
      %p37 = scmp.ne.s32.totalorder %s29, %s31
      %p38 = scmp.eq.s32.totalorder %s14, 3
      %p39 = por %p37, %p38
      %p40 = scmp.ne.s32.totalorder %s31, %s32
      %p41 = scmp.eq.s32.totalorder %s14, 0
      %p42 = por %p40, %p41
      %p43 = scmp.ne.s32.totalorder %s31, %s32
      %p44 = scmp.eq.s32.totalorder %s15, 3
      %p45 = por %p43, %p44
      %p47 = scmp.ne.s32.totalorder %s32, %s46
      %p48 = scmp.eq.s32.totalorder %s15, 0
      %p49 = por %p47, %p48
      %s51 = sadd.s32 %s50, 1
      %p54 = scmp.eq.s32.totalorder %s9, 3
      %p55 = scmp.ne.s32.totalorder %s50, %s52
      %p56 = scmp.eq.s32.totalorder %s9, 0
      %p57 = por %p55, %p56
      %p58 = scmp.ne.s32.totalorder %s50, %s52
      %p59 = scmp.eq.s32.totalorder %s14, 3
      %p60 = por %p58, %p59
      %p61 = scmp.ne.s32.totalorder %s52, %s53
      %p62 = scmp.eq.s32.totalorder %s14, 0
      %p63 = por %p61, %p62
      %p64 = scmp.ne.s32.totalorder %s52, %s53
      %p65 = scmp.eq.s32.totalorder %s15, 3
      %p66 = por %p64, %p65
      %p68 = scmp.ne.s32.totalorder %s53, %s67
      %p69 = scmp.eq.s32.totalorder %s15, 0
      %p70 = por %p68, %p69
      %s71 = smul.u32 %s16, 2
      %s72 = sadd.s32 %s71, %s17
      %s73 = smul.u32 %s28, 2
      %s74 = sadd.s32 %s73, %s24
      %s75 = ssub.s32 %s72, %s74
      %p76 = scmp.eq.s32.totalorder %s75, 0
      %s78 = sadd.s32 %s77, 1
      %s79 = scalar_select %p76, %s77, %s78
      %p82 = pneg %p76
      %p83 = scmp.eq.s32.totalorder %s9, 3
      %p84 = por %p82, %p83
      %p85 = scmp.ne.s32.totalorder %s77, %s80
      %p86 = scmp.eq.s32.totalorder %s9, 0
      %p87 = por %p85, %p86
      %p88 = scmp.ne.s32.totalorder %s77, %s80
      %p89 = scmp.eq.s32.totalorder %s14, 3
      %p90 = por %p88, %p89
      %p91 = scmp.ne.s32.totalorder %s80, %s81
      %p92 = scmp.eq.s32.totalorder %s14, 0
      %p93 = por %p91, %p92
      %p94 = scmp.ne.s32.totalorder %s80, %s81
      %p95 = scmp.eq.s32.totalorder %s15, 3
      %p96 = por %p94, %p95
      %p98 = scmp.ne.s32.totalorder %s81, %s97
      %p99 = scmp.eq.s32.totalorder %s15, 0
      %p100 = por %p98, %p99
      %s101 = ssub.s32 %s16, %s28
      %p102 = scmp.eq.s32.totalorder %s101, 0
      %s104 = sadd.s32 %s103, 1
      %s105 = scalar_select %p102, %s103, %s104
      %p108 = pneg %p102
      %p109 = scmp.eq.s32.totalorder %s9, 3
      %p110 = por %p108, %p109
      %p111 = scmp.ne.s32.totalorder %s103, %s106
      %p112 = scmp.eq.s32.totalorder %s9, 0
      %p113 = por %p111, %p112
      %p114 = scmp.ne.s32.totalorder %s103, %s106
      %p115 = scmp.eq.s32.totalorder %s14, 3
      %p116 = por %p114, %p115
      %p117 = scmp.ne.s32.totalorder %s106, %s107
      %p118 = scmp.eq.s32.totalorder %s14, 0
      %p119 = por %p117, %p118
      %p120 = scmp.ne.s32.totalorder %s106, %s107
      %p121 = scmp.eq.s32.totalorder %s15, 3
      %p122 = por %p120, %p121
      %p124 = scmp.ne.s32.totalorder %s107, %s123
      %p125 = scmp.eq.s32.totalorder %s15, 0
      %p126 = por %p124, %p125
      %p127 = scmp.le.s32.totalorder 1, %s9
      %p128 = scmp.lt.s32.totalorder %s9, 5
      %p129 = pnand %p127, %p128
      %p130 = pneg %p129
      // Predicated region
      $region9: #{dsh_loss.1} parent=5 // pred_check
        _
      $region10: #{dsh_loss.1} parent=5 // pred_check_branch
        %132 = sbr.rel (%p129) target = $region12
      $region11: #{dsh_loss.1} parent=5 // pred_region
        %s133 = ssub.s32 %s9, 1
        // Predicated region
        $region13: #{dsh_loss.1} parent=11 // pred_check
          %p134 = pneg %p42
        $region14: #{dsh_loss.1} parent=11 // pred_check_branch
          %136 = sbr.rel (%p134) target = $region16
        $region15: #{dsh_loss.1} parent=11 // pred_region
          _
        $region16: #{dsh_loss.1} parent=11 // pred_fallthru
          _
        // Predicated region
        $region17: #{dsh_loss.1} parent=11 // pred_check
          %p137 = pneg %p63
        $region18: #{dsh_loss.1} parent=11 // pred_check_branch
          %139 = sbr.rel (%p137) target = $region20
        $region19: #{dsh_loss.1} parent=11 // pred_region
          _
        $region20: #{dsh_loss.1} parent=11 // pred_fallthru
          _
      $region12: #{dsh_loss.1} parent=5 // pred_fallthru
        _
      %p140 = scmp.lt.s32.totalorder %s9, 4
      // Predicated region
      $region21: #{dsh_loss.1} parent=5 // pred_check
        %p141 = pneg %p140
      $region22: #{dsh_loss.1} parent=5 // pred_check_branch
        %143 = sbr.rel (%p141) target = $region24
      $region23: #{dsh_loss.1} parent=5 // pred_region
        // Predicated region
        $region25: #{dsh_loss.1} parent=23 // pred_check
          %p144 = pneg %p87
        $region26: #{dsh_loss.1} parent=23 // pred_check_branch
          %146 = sbr.rel (%p144) target = $region28
        $region27: #{dsh_loss.1} parent=23 // pred_region
          %s147 = sand.u32 %s77, 1
          %s148 = sand.u32 %s77, 1
          %s149 = smul.addr %s148, 32
          %s150 = scalar_lea.vmem [#allocation3], %s149
          %s151 = smul.u32 %s16, 2
          %s152 = sadd.s32 %s151, %s17
          %s153 = smul.addr %s152, 8
          %s154 = scalar_lea.vmem %s2, %s153
          // Predicated region
          $region29: #{dsh_loss.1} parent=27 // pred_check
            _
          $region30: #{dsh_loss.1} parent=27 // pred_check_branch
            %156 = sbr.rel (0) target = $region32
          $region31: #{dsh_loss.1} parent=27 // pred_region
            // Predicated region
            $region33: #{dsh_loss.1} parent=31 // pred_check
              _
            $region34: #{dsh_loss.1} parent=31 // pred_check_branch
              %158 = sbr.rel (0) target = $region36
            $region35: #{dsh_loss.1} parent=31 // pred_region
              // Predicated region
              $region48: #{dsh_loss.1} parent=35 // pred_check
                _
              $region49: #{dsh_loss.1} parent=35 // pred_check_branch
                %180 = sbr.rel (0) target = $region51
              $region50: #{dsh_loss.1} parent=35 // pred_region
                loop: start=0, step=1, limit=1
                $region52: #{dsh_loss.1} parent=50 // loop_pre_header
                  _
                $region53: #{dsh_loss.1} parent=50 // loop_header
                  %s182 = sphi 0, %s186
                  %p183 = scmp.ge.s32.totalorder %s182, 1
                  %s187 = sphi %s154, %s154
                  %s188 = sphi %s150, %s150
                $region54: #{dsh_loss.1} parent=50 // loop_header_branch
                  %185 = sbr.rel (%p183) target = $region58
                $region55: #{dsh_loss.1} parent=50 // loop_body
                  %v189 = vld [vmem:[%s187] sm:$0xff]
                  %190 = vst [vmem:[%s188] sm:$0xff] %v189
                  %v191 = vld [vmem:[%s187 + $0x20] sm:$0xff]
                  %192 = vst [vmem:[%s188 + $0x8] sm:$0xff] %v191
                  %v193 = vld [vmem:[%s187 + $0x40] sm:$0xff]
                  %194 = vst [vmem:[%s188 + $0x10] sm:$0xff] %v193
                  %v195 = vld [vmem:[%s187 + $0x60] sm:$0xff]
                  %196 = vst [vmem:[%s188 + $0x18] sm:$0xff] %v195
                $region56: #{dsh_loss.1} parent=50 // loop_footer
                  %s186 = sadd.s32 1, %s182
                $region57: #{dsh_loss.1} parent=50 // loop_footer_branch
                  %181 = sbr.rel target = $region53
                $region58: #{dsh_loss.1} parent=50 // loop_exit
                  _
              $region51: #{dsh_loss.1} parent=35 // pred_fallthru
                _
              // Predicated region
              $region59: #{dsh_loss.1} parent=35 // pred_check
                _
              $region60: #{dsh_loss.1} parent=35 // pred_check_branch
                %198 = sbr.rel target = $region62
              $region61: #{dsh_loss.1} parent=35 // pred_region
                _
              $region62: #{dsh_loss.1} parent=35 // pred_fallthru
                _
            $region36: #{dsh_loss.1} parent=31 // pred_fallthru
              _
            // Predicated region
            $region37: #{dsh_loss.1} parent=31 // pred_check
              _
            $region38: #{dsh_loss.1} parent=31 // pred_check_branch
              %160 = sbr.rel target = $region40
            $region39: #{dsh_loss.1} parent=31 // pred_region
              %s162 = ssub.s32 256, 1
              loop: start=0, step=1, limit=1
              $region41: #{dsh_loss.1} parent=39 // loop_pre_header
                _
              $region42: #{dsh_loss.1} parent=39 // loop_header
                %s164 = sphi 0, %s168
                %p165 = scmp.ge.s32.totalorder %s164, 1
                %s169 = sphi %s154, %s154
                %s170 = sphi %s150, %s150
              $region43: #{dsh_loss.1} parent=39 // loop_header_branch
                %167 = sbr.rel (%p165) target = $region47
              $region44: #{dsh_loss.1} parent=39 // loop_body
                %v171 = vld [vmem:[%s169] sm:%s162]
                %172 = vst [vmem:[%s170] sm:%s162] %v171
                %v173 = vld [vmem:[%s169 + $0x20] sm:%s162]
                %174 = vst [vmem:[%s170 + $0x8] sm:%s162] %v173
                %v175 = vld [vmem:[%s169 + $0x40] sm:%s162]
                %176 = vst [vmem:[%s170 + $0x10] sm:%s162] %v175
                %v177 = vld [vmem:[%s169 + $0x60] sm:%s162]
                %178 = vst [vmem:[%s170 + $0x18] sm:%s162] %v177
              $region45: #{dsh_loss.1} parent=39 // loop_footer
                %s168 = sadd.s32 1, %s164
              $region46: #{dsh_loss.1} parent=39 // loop_footer_branch
                %163 = sbr.rel target = $region42
              $region47: #{dsh_loss.1} parent=39 // loop_exit
                _
            $region40: #{dsh_loss.1} parent=31 // pred_fallthru
              _
          $region32: #{dsh_loss.1} parent=27 // pred_fallthru
            _
          %199 = vnop
        $region28: #{dsh_loss.1} parent=23 // pred_fallthru
          _
      $region24: #{dsh_loss.1} parent=5 // pred_fallthru
        _
      %p200 = scmp.le.s32.totalorder 1, %s9
      %p201 = scmp.lt.s32.totalorder %s9, 5
      %p202 = pnand %p200, %p201
      %p203 = pneg %p202
      // Predicated region
      $region63: #{dsh_loss.1} parent=5 // pred_check
        _
      $region64: #{dsh_loss.1} parent=5 // pred_check_branch
        %205 = sbr.rel (%p202) target = $region66
      $region65: #{dsh_loss.1} parent=5 // pred_region
        %s206 = ssub.s32 %s9, 1
        %s207 = sand.u32 %s80, 1
        %s208 = sand.u32 %s80, 1
        %s209 = smul.addr %s208, 32
        %s210 = scalar_lea.vmem [#allocation3], %s209
        // Predicated region
        $region67: #{dsh_loss.1} parent=65 // pred_check
          %p211 = pneg %p93
        $region68: #{dsh_loss.1} parent=65 // pred_check_branch
          %213 = sbr.rel (%p211) target = $region70
        $region69: #{dsh_loss.1} parent=65 // pred_region
          _
        $region70: #{dsh_loss.1} parent=65 // pred_fallthru
          _
        %p214 = pneg %p42
        %p215 = pneg %p39
        %p216 = pneg %p63
        %p217 = pneg %p60
        %s218 = sand.u32 %s80, 1
        %s219 = sand.u32 %s80, 1
        %s220 = smul.addr %s219, 32
        %s221 = scalar_lea.vmem [#allocation3], %s220
        %p222 = pneg %p93
        %p223 = pneg %p90
        %p224 = pneg %p119
        %p225 = pneg %p116
        %p226 = scmp.lt.s32.totalorder %s18, 1
        %s227 = scalar_select %p226, %s18, 1
        %s228 = scalar_lea.vmem %s3, %s227
        %s229 = smul.u32 %s18, 2
        %s230 = sadd.s32 %s229, %s19
        %p231 = scmp.lt.s32.totalorder %s18, 1
        %s232 = scalar_select %p231, %s18, 1
        %s233 = scalar_lea.vmem %s3, %s232
        %p234 = scmp.eq.s32.totalorder %s19, 0
        // Predicated region
        $region71: #{dsh_loss.1} parent=65 // pred_check
          %p235 = pneg %p234
        $region72: #{dsh_loss.1} parent=65 // pred_check_branch
          %237 = sbr.rel (%p235) target = $region74
        $region73: #{dsh_loss.1} parent=65 // pred_region
          %238 = vst [vmem:[#allocation2] sm:$0xff] 0.0
        $region74: #{dsh_loss.1} parent=65 // pred_fallthru
          _
        %v239 = vld [vmem:[%s0] sm:$0xff]
        %v240 = vld [vmem:[%s1] sm:$0xff]
        %v241 = vld [vmem:[%s210] sm:$0xff]
        %v242 = vld [vmem:[%s210 + $0x8] sm:$0xff]
        %v243 = vld [vmem:[%s210 + $0x10] sm:$0xff]
        %v244 = vld [vmem:[%s210 + $0x18] sm:$0x1]
        %v245 = vadd.f32 %v239, %v239
        %vm246 = vcmask 130048
        %v248 = vsel %vm246, %v245, 0
        %250 = vmatprep.subr.mxu0 0.0
        %251 = vmatpush1.msra.mxu0 0.0
        %252 = vmatprep.subr.mxu0 0.0
        %253 = vmatpush1.msra.mxu0 0.0
        %254 = vmatprep.subr.mxu0 0.0
        %255 = vmatpush1.msra.mxu0 0.0
        %256 = vmatprep.subr.mxu0 0.0
        %257 = vmatpush1.msra.mxu0 0.0
        %258 = vmatprep.subr.mxu0 0.0
        %259 = vmatpush1.msra.mxu0 0.0
        %260 = vmatprep.subr.mxu0 0.0
        %261 = vmatpush1.msra.mxu0 0.0
        %262 = vmatprep.subr.mxu0 0.0
        %263 = vmatpush1.msra.mxu0 0.0
        %264 = vmatprep.subr.mxu0 0.0
        %265 = vmatpush1.msra.mxu0 0.0
        %266 = vmatprep.subr.mxu0 0.0
        %267 = vmatpush1.msra.mxu0 0.0
        %268 = vmatprep.subr.mxu0 0.0
        %269 = vmatpush1.msra.mxu0 0.0
        %270 = vmatprep.subr.mxu0 0.0
        %271 = vmatpush1.msra.mxu0 0.0
        %272 = vmatprep.subr.mxu0 0.0
        %273 = vmatpush1.msra.mxu0 0.0
        %274 = vmatprep.subr.mxu0 0.0
        %275 = vmatpush1.msra.mxu0 0.0
        %276 = vmatprep.subr.mxu0 0.0
        %277 = vmatpush1.msra.mxu0 0.0
        %278 = vmatprep.subr.mxu0 0.0
        %279 = vmatpush1.msra.mxu0 %v242
        %280 = vmatprep.subr.mxu0 0.0
        %281 = vmatpush1.msra.mxu0 %v241
        %282 = vmatprep.subr.mxu0 0.0
        %283 = vmatpush2.msra.mxu0 0.0
        %284 = vmatprep.subr.mxu0 0.0
        %285 = vmatpush2.msra.mxu0 0.0
        %286 = vmatprep.subr.mxu0 0.0
        %287 = vmatpush2.msra.mxu0 0.0
        %288 = vmatprep.subr.mxu0 0.0
        %289 = vmatpush2.msra.mxu0 0.0
        %290 = vmatprep.subr.mxu0 0.0
        %291 = vmatpush2.msra.mxu0 0.0
        %292 = vmatprep.subr.mxu0 0.0
        %293 = vmatpush2.msra.mxu0 0.0
        %294 = vmatprep.subr.mxu0 0.0
        %295 = vmatpush2.msra.mxu0 0.0
        %296 = vmatprep.subr.mxu0 0.0
        %297 = vmatpush2.msra.mxu0 0.0
        %298 = vmatprep.subr.mxu0 0.0
        %299 = vmatpush2.msra.mxu0 0.0
        %300 = vmatprep.subr.mxu0 0.0
        %301 = vmatpush2.msra.mxu0 0.0
        %302 = vmatprep.subr.mxu0 0.0
        %303 = vmatpush2.msra.mxu0 0.0
        %304 = vmatprep.subr.mxu0 0.0
        %305 = vmatpush2.msra.mxu0 0.0
        %306 = vmatprep.subr.mxu0 0.0
        %307 = vmatpush2.msra.mxu0 0.0
        %308 = vmatprep.subr.mxu0 0.0
        %309 = vmatpush2.msra.mxu0 0.0
        %310 = vmatprep.subr.mxu0 0.0
        %311 = vmatpush2.msra.mxu0 0.0
        %312 = vmatprep.subr.mxu0 0.0
        %313 = vmatpush2.msra.mxu0 0.0
        %314 = vmatprep.mubr.f32.mxu0 0.0
        %315 = vmatmul.mubr.f32.gmra.mxu0 %v248
        %v316 = vpop.f32.mrf.mxu0
        %v317 = vadd.f32 0.0, %v316
        %v318 = vpop.f32.mrf.mxu0
        %319 = vdwg.mxu0
        %vm320 = vcmask 64512
        %v322 = vsel %vm320, %v240, 0
        %324 = vmatprep.subr.mxu0 0.0
        %325 = vmatpush1.msra.mxu0 0.0
        %326 = vmatprep.subr.mxu0 0.0
        %327 = vmatpush1.msra.mxu0 0.0
        %328 = vmatprep.subr.mxu0 0.0
        %329 = vmatpush1.msra.mxu0 0.0
        %330 = vmatprep.subr.mxu0 0.0
        %331 = vmatpush1.msra.mxu0 0.0
        %332 = vmatprep.subr.mxu0 0.0
        %333 = vmatpush1.msra.mxu0 0.0
        %334 = vmatprep.subr.mxu0 0.0
        %335 = vmatpush1.msra.mxu0 0.0
        %336 = vmatprep.subr.mxu0 0.0
        %337 = vmatpush1.msra.mxu0 0.0
        %338 = vmatprep.subr.mxu0 0.0
        %339 = vmatpush1.msra.mxu0 0.0
        %340 = vmatprep.subr.mxu0 0.0
        %341 = vmatpush1.msra.mxu0 0.0
        %342 = vmatprep.subr.mxu0 0.0
        %343 = vmatpush1.msra.mxu0 0.0
        %344 = vmatprep.subr.mxu0 0.0
        %345 = vmatpush1.msra.mxu0 0.0
        %346 = vmatprep.subr.mxu0 0.0
        %347 = vmatpush1.msra.mxu0 0.0
        %348 = vmatprep.subr.mxu0 0.0
        %349 = vmatpush1.msra.mxu0 0.0
        %350 = vmatprep.subr.mxu0 0.0
        %351 = vmatpush1.msra.mxu0 0.0
        %352 = vmatprep.subr.mxu0 0.0
        %353 = vmatpush1.msra.mxu0 0.0
        %354 = vmatprep.subr.mxu0 0.0
        %355 = vmatpush1.msra.mxu0 %v243
        %356 = vmatprep.subr.mxu0 0.0
        %357 = vmatpush2.msra.mxu0 0.0
        %358 = vmatprep.subr.mxu0 0.0
        %359 = vmatpush2.msra.mxu0 0.0
        %360 = vmatprep.subr.mxu0 0.0
        %361 = vmatpush2.msra.mxu0 0.0
        %362 = vmatprep.subr.mxu0 0.0
        %363 = vmatpush2.msra.mxu0 0.0
        %364 = vmatprep.subr.mxu0 0.0
        %365 = vmatpush2.msra.mxu0 0.0
        %366 = vmatprep.subr.mxu0 0.0
        %367 = vmatpush2.msra.mxu0 0.0
        %368 = vmatprep.subr.mxu0 0.0
        %369 = vmatpush2.msra.mxu0 0.0
        %370 = vmatprep.subr.mxu0 0.0
        %371 = vmatpush2.msra.mxu0 0.0
        %372 = vmatprep.subr.mxu0 0.0
        %373 = vmatpush2.msra.mxu0 0.0
        %374 = vmatprep.subr.mxu0 0.0
        %375 = vmatpush2.msra.mxu0 0.0
        %376 = vmatprep.subr.mxu0 0.0
        %377 = vmatpush2.msra.mxu0 0.0
        %378 = vmatprep.subr.mxu0 0.0
        %379 = vmatpush2.msra.mxu0 0.0
        %380 = vmatprep.subr.mxu0 0.0
        %381 = vmatpush2.msra.mxu0 0.0
        %382 = vmatprep.subr.mxu0 0.0
        %383 = vmatpush2.msra.mxu0 0.0
        %384 = vmatprep.subr.mxu0 0.0
        %385 = vmatpush2.msra.mxu0 0.0
        %386 = vmatprep.subr.mxu0 0.0
        %387 = vmatpush2.msra.mxu0 0.0
        %388 = vmatprep.mubr.f32.mxu0 0.0
        %389 = vmatmul.mubr.f32.gmra.mxu0 %v322
        %v390 = vpop.f32.mrf.mxu0
        %v391 = vadd.f32 0.0, %v390
        %v392 = vpop.f32.mrf.mxu0
        %393 = vdwg.mxu0
        %v394 = vmul.f32 %v239, %v239
        %v395 = vsel %vm246, %v394, 0.0
        %396 = vadd.xlane.f32.xlu0 %v395
        %v397 = vpop.xlane.xlu0 %396
        %v398 = vlaneseq
        %v399 = vshrl.u32 %v398, 7
        %v400 = vsub.s32 0, %v399
        %v401 = vrot.slane %v244, %v400
        %v402 = vadd.f32 %v397, %v401
        %v403 = vsub.f32 %v402, %v317
        %v404 = vmax.f32 %v403, 0.0
        %v405 = vld [vmem:[#allocation2] sm:$0xff]
        %vm406 = vcmp.eq.f32.partialorder %v391, 0.0
        %v407 = vsub.f32 32.0, %v404
        %v408 = vmax.f32 %v407, 0.0
        %v409 = vsel %vm406, %v408, %v404
        %v410 = vadd.f32 %v405, %v409
        %411 = vst [vmem:[#allocation2] sm:$0xff] %v410
        %p412 = scmp.eq.s32.totalorder %s19, 1
        // Predicated region
        $region75: #{dsh_loss.1} parent=65 // pred_check
          %p413 = pneg %p412
        $region76: #{dsh_loss.1} parent=65 // pred_check_branch
          %415 = sbr.rel (%p413) target = $region78
        $region77: #{dsh_loss.1} parent=65 // pred_region
          %v416 = vld [vmem:[#allocation2] sm:$0xff]
          %417 = vadd.xlane.f32.xlu0 %v416
          %v418 = vpop.xlane.xlu0 %417
          %v419 = vrot.slane %v418, 4
          %v420 = vadd.f32 %v418, %v419
          %v421 = vrot.slane %v420, 2
          %v422 = vadd.f32 %v420, %v421
          %v423 = vrot.slane %v422, 1
          %v424 = vadd.f32 %v422, %v423
          %s425 = vtos %v424
          %v426 = vstv %s425
          %vm427 = vcmask 0
          %428 = vst.msk [vmem:[%s233] sm:$0x1] %vm427, %v426
        $region78: #{dsh_loss.1} parent=65 // pred_fallthru
          _
        %p429 = scmp.lt.s32.totalorder %s18, 1
        %s430 = scalar_select %p429, %s18, 1
        %s431 = scalar_lea.vmem %s3, %s430
        // Predicated region
        $region79: #{dsh_loss.1} parent=65 // pred_check
          %p432 = pneg %p116
        $region80: #{dsh_loss.1} parent=65 // pred_check_branch
          %434 = sbr.rel (%p432) target = $region82
        $region81: #{dsh_loss.1} parent=65 // pred_region
          _
        $region82: #{dsh_loss.1} parent=65 // pred_fallthru
          _
      $region66: #{dsh_loss.1} parent=5 // pred_fallthru
        _
      %p435 = scmp.le.s32.totalorder 2, %s9
      // Predicated region
      $region83: #{dsh_loss.1} parent=5 // pred_check
        %p436 = pneg %p435
      $region84: #{dsh_loss.1} parent=5 // pred_check_branch
        %438 = sbr.rel (%p436) target = $region86
      $region85: #{dsh_loss.1} parent=5 // pred_region
        %s439 = ssub.s32 %s9, 2
        // Predicated region
        $region87: #{dsh_loss.1} parent=85 // pred_check
          %p440 = pneg %p122
        $region88: #{dsh_loss.1} parent=85 // pred_check_branch
          %442 = sbr.rel (%p440) target = $region90
        $region89: #{dsh_loss.1} parent=85 // pred_region
          %p443 = scmp.lt.s32.totalorder %s20, 1
          %s444 = scalar_select %p443, %s20, 1
          %s445 = scalar_lea.vmem %s3, %s444
        $region90: #{dsh_loss.1} parent=85 // pred_fallthru
          _
      $region86: #{dsh_loss.1} parent=5 // pred_fallthru
        _
    $region6: #{dsh_loss.1} parent=1 // loop_footer
      %s13 = sadd.s32 1, %s9
    $region7: #{dsh_loss.1} parent=1 // loop_footer_branch
      %8 = sbr.rel target = $region3
    $region8: #{dsh_loss.1} parent=1 // loop_exit
      _

</llo_original>
